<compile_context>
chip_gen: v7x
topology: tpu7x:2x2x1
jax: 0.10.0
libtpu: 0.0.40
codegen_flags: <defaults>
</compile_context>

<pallas_src>
import functools

import jax
import jax.numpy as jnp
from jax.experimental import pallas as pl
from jax.experimental.pallas import tpu as pltpu


_BLOCK_BUDGET_BYTES = 4 << 20   # per-input block; 2 inputs x 2 bufs ~ 16 MiB
_VMEM_LIMIT_BYTES = 32 << 20    # safe on v5e/v6e (128 MiB) and v7x (64 MiB)


def _round_up(x, m):
    return (x + m - 1) // m * m


def _round_down(x, m):
    return max(m, (x // m) * m)


def _choose_tiles(n, hw, itemsize):
    """Pick (row_tile, hw_tile) so one input block stays <= _BLOCK_BUDGET_BYTES."""
    max_elems = max(_BLOCK_BUDGET_BYTES // itemsize, 8 * 128)
    if hw <= max_elems // 8:
        # Full spatial extent fits in a block with >= 8 rows: no HW tiling.
        hw_tile = hw
        row_tile = min(_round_down(max_elems // hw, 8), _round_up(n, 8))
        # Expose >= 2 row blocks for 2-TensorCore sharding (v7x) when that
        # still leaves reasonably sized blocks.
        if n > 8 and n <= row_tile:
            half = max(8, _round_up((n + 1) // 2, 8))
            if half * hw * itemsize >= (256 << 10):
                row_tile = half
    else:
        # Large images: tile the spatial (lane) axis in multiples of 128.
        row_tile = 8
        hw_tile = _round_down(max_elems // row_tile, 128)
    return row_tile, hw_tile


def _iou_sums_kernel(x_ref, t_ref, inter_ref, union_ref,
                     inter_acc, union_acc, *, hw, hw_tile, mask_hw):
    k = pl.program_id(1)  # HW (reduction) axis, innermost

    @pl.when(k == 0)
    def _():
        inter_acc[...] = jnp.zeros_like(inter_acc)
        union_acc[...] = jnp.zeros_like(union_acc)

    x = x_ref[...].astype(jnp.float32)
    t = t_ref[...].astype(jnp.float32)

    if mask_hw:
        # Zero out lanes past the true HW extent in the last (partial) block.
        col = jax.lax.broadcasted_iota(jnp.int32, x.shape, 1)
        valid = (k * hw_tile + col) < hw
        x = jnp.where(valid, x, 0.0)
        t = jnp.where(valid, t, 0.0)

    inter_acc[...] += jnp.sum(x * t, axis=-1, keepdims=True)
    union_acc[...] += jnp.sum(x + t, axis=-1, keepdims=True)

    @pl.when(k == pl.num_programs(1) - 1)
    def _():
        inter_ref[...] = inter_acc[...]
        union_ref[...] = union_acc[...]


def iou_loss(inp, target, epsilon=1e-9, row_tile=None, hw_tile=None):
    assert inp.shape == target.shape
    B, C, H, W = inp.shape
    N, HW = B * C, H * W

    # Free reshape (row-major contiguous); no dtype cast, no padding in HBM.
    x = inp.reshape(N, HW)
    t = target.reshape(N, HW)

    itemsize = jnp.dtype(inp.dtype).itemsize
    auto_rt, auto_ht = _choose_tiles(N, HW, itemsize)
    row_tile = auto_rt if row_tile is None else row_tile
    hw_tile = auto_ht if hw_tile is None else hw_tile

    n_row_blocks = pl.cdiv(N, row_tile)
    n_hw_blocks = pl.cdiv(HW, hw_tile)
    mask_hw = (HW % hw_tile) != 0

    kernel = functools.partial(
        _iou_sums_kernel, hw=HW, hw_tile=hw_tile, mask_hw=mask_hw)

    inter, union = pl.pallas_call(
        kernel,
        out_shape=(
            jax.ShapeDtypeStruct((N, 1), jnp.float32),
            jax.ShapeDtypeStruct((N, 1), jnp.float32),
        ),
        grid_spec=pltpu.PrefetchScalarGridSpec(
            num_scalar_prefetch=0,
            grid=(n_row_blocks, n_hw_blocks),
            in_specs=[
                pl.BlockSpec((row_tile, hw_tile), lambda i, k: (i, k)),
                pl.BlockSpec((row_tile, hw_tile), lambda i, k: (i, k)),
            ],
            out_specs=[
                pl.BlockSpec((row_tile, 1), lambda i, k: (i, 0)),
                pl.BlockSpec((row_tile, 1), lambda i, k: (i, 0)),
            ],
            scratch_shapes=[
                pltpu.VMEM((row_tile, 1), jnp.float32),
                pltpu.VMEM((row_tile, 1), jnp.float32),
            ],
        ),
        compiler_params=pltpu.CompilerParams(
            dimension_semantics=("parallel", "arbitrary"),
            vmem_limit_bytes=_VMEM_LIMIT_BYTES,
        ),
    )(x, t)

    # Tiny (N,)-sized glue: divide + mean in plain JAX.
    inter = inter[:, 0]
    union = union[:, 0]
    iou = inter / (union + jnp.float32(epsilon))
    return (1.0 - jnp.mean(iou)).astype(jnp.float32)


def iou_loss_ref(inp, target, epsilon=1e-9):
    xf = inp.astype(jnp.float32)
    tf = target.astype(jnp.float32)
    union = (xf + tf).sum(axis=(-1, -2))
    inter = (xf * tf).sum(axis=(-1, -2))
    iou = inter / (union + epsilon)
    return 1.0 - iou.mean()


if __name__ == "__main__":
    key = jax.random.PRNGKey(0)
    k1, k2 = jax.random.split(key)

    # Main check: small NCHW shape, auto tile selection (single block here).
    shape = (2, 4, 16, 16)  # (B, C, H, W)
    x = jax.random.uniform(k1, shape, dtype=jnp.float32)
    t = (jax.random.uniform(k2, shape, dtype=jnp.float32) > 0.5).astype(
        jnp.float32)
    out = jax.block_until_ready(jax.jit(iou_loss)(x, t))
    ref = jax.block_until_ready(iou_loss_ref(x, t))
    assert out.shape == ()
    assert jnp.allclose(out, ref, rtol=1e-5, atol=1e-6), (out, ref)

    # Exercise the HW-tiled reduction path (mask on partial HW block,
    # partial row block, scratch accumulation across HW steps).
    shape2 = (2, 3, 10, 20)  # N=6 rows, HW=200 (not a multiple of 128)
    x2 = jax.random.uniform(k1, shape2, dtype=jnp.float32)
    t2 = (jax.random.uniform(k2, shape2, dtype=jnp.float32) > 0.5).astype(
        jnp.float32)
    out2 = jax.block_until_ready(
        jax.jit(functools.partial(iou_loss, row_tile=8, hw_tile=128))(x2, t2))
    ref2 = jax.block_until_ready(iou_loss_ref(x2, t2))
    assert jnp.allclose(out2, ref2, rtol=1e-5, atol=1e-6), (out2, ref2)

    # bf16 ingestion path (halves HBM reads; f32 accumulation in-kernel).
    out_bf16 = jax.block_until_ready(
        jax.jit(iou_loss)(x.astype(jnp.bfloat16), t.astype(jnp.bfloat16)))
    assert jnp.isfinite(out_bf16)

    print("KERNEL_OK")
</pallas_src>

<mosaic_0001>
module attributes {stable_mosaic.version = 11 : i64} {
  func.func @_iou_sums_kernel(%arg0: i32, %arg1: i32, %arg2: memref<8x256xf32, #tpu.memory_space<vmem>>, %arg3: memref<8x256xf32, #tpu.memory_space<vmem>>, %arg4: memref<8x1xf32, #tpu.memory_space<vmem>>, %arg5: memref<8x1xf32, #tpu.memory_space<vmem>>, %arg6: memref<8x1xf32, #tpu.memory_space<vmem>>, %arg7: memref<8x1xf32, #tpu.memory_space<vmem>>) attributes {dimension_semantics = [#tpu.dimension_semantics<parallel>, #tpu.dimension_semantics<arbitrary>], iteration_bounds = array<i64: 1, 1>, scalar_prefetch = 0 : i64, scratch_operands = 2 : i64, tpu.core_type = #tpu.core_type<tc>, window_params = [{transform_indices = @transform_0, window_bounds = array<i64: 8, 256>}, {transform_indices = @transform_1, window_bounds = array<i64: 8, 256>}, {transform_indices = @transform_2, window_bounds = array<i64: 8, 1>}, {transform_indices = @transform_3, window_bounds = array<i64: 8, 1>}]} {
    %c0_i32 = arith.constant 0 : i32
    %0 = arith.cmpi eq, %arg1, %c0_i32 : i32
    %1 = arith.extui %0 : i1 to i32
    %c0_i32_0 = arith.constant 0 : i32
    %2 = arith.cmpi ne, %1, %c0_i32_0 : i32
    scf.if %2 {
      %cst_15 = arith.constant 0.000000e+00 : f32
      %20 = vector.broadcast %cst_15 : f32 to vector<8x1xf32>
      %c0_16 = arith.constant 0 : index
      %c0_17 = arith.constant 0 : index
      %21 = vector.load %arg6[%c0_16, %c0_17] : memref<8x1xf32, #tpu.memory_space<vmem>>, vector<8x1xf32>
      tpu.vector_store %arg6[%c0_16, %c0_17], %20 {strides = array<i32>} : memref<8x1xf32, #tpu.memory_space<vmem>>, vector<8x1xf32>,
      %cst_18 = arith.constant 0.000000e+00 : f32
      %22 = vector.broadcast %cst_18 : f32 to vector<8x1xf32>
      %c0_19 = arith.constant 0 : index
      %c0_20 = arith.constant 0 : index
      %23 = vector.load %arg7[%c0_19, %c0_20] : memref<8x1xf32, #tpu.memory_space<vmem>>, vector<8x1xf32>
      tpu.vector_store %arg7[%c0_19, %c0_20], %22 {strides = array<i32>} : memref<8x1xf32, #tpu.memory_space<vmem>>, vector<8x1xf32>,
    } else {
    }
    %c0 = arith.constant 0 : index
    %c0_1 = arith.constant 0 : index
    %3 = vector.load %arg2[%c0, %c0_1] : memref<8x256xf32, #tpu.memory_space<vmem>>, vector<8x256xf32>
    %c0_2 = arith.constant 0 : index
    %c0_3 = arith.constant 0 : index
    %4 = vector.load %arg3[%c0_2, %c0_3] : memref<8x256xf32, #tpu.memory_space<vmem>>, vector<8x256xf32>
    %c0_4 = arith.constant 0 : index
    %c0_5 = arith.constant 0 : index
    %5 = vector.load %arg6[%c0_4, %c0_5] : memref<8x1xf32, #tpu.memory_space<vmem>>, vector<8x1xf32>
    %6 = arith.mulf %3, %4 : vector<8x256xf32>
    %cst = arith.constant dense<0.000000e+00> : vector<8xf32>
    %7 = vector.multi_reduction <add>, %6, %cst [1] : vector<8x256xf32> to vector<8xf32>
    %8 = vector.shape_cast %7 : vector<8xf32> to vector<8x1xf32>
    %9 = arith.addf %5, %8 : vector<8x1xf32>
    %c0_6 = arith.constant 0 : index
    %c0_7 = arith.constant 0 : index
    %10 = vector.load %arg6[%c0_6, %c0_7] : memref<8x1xf32, #tpu.memory_space<vmem>>, vector<8x1xf32>
    tpu.vector_store %arg6[%c0_6, %c0_7], %9 {strides = array<i32>} : memref<8x1xf32, #tpu.memory_space<vmem>>, vector<8x1xf32>,
    %c0_8 = arith.constant 0 : index
    %c0_9 = arith.constant 0 : index
    %11 = vector.load %arg7[%c0_8, %c0_9] : memref<8x1xf32, #tpu.memory_space<vmem>>, vector<8x1xf32>
    %12 = arith.addf %3, %4 : vector<8x256xf32>
    %cst_10 = arith.constant dense<0.000000e+00> : vector<8xf32>
    %13 = vector.multi_reduction <add>, %12, %cst_10 [1] : vector<8x256xf32> to vector<8xf32>
    %14 = vector.shape_cast %13 : vector<8xf32> to vector<8x1xf32>
    %15 = arith.addf %11, %14 : vector<8x1xf32>
    %c0_11 = arith.constant 0 : index
    %c0_12 = arith.constant 0 : index
    %16 = vector.load %arg7[%c0_11, %c0_12] : memref<8x1xf32, #tpu.memory_space<vmem>>, vector<8x1xf32>
    tpu.vector_store %arg7[%c0_11, %c0_12], %15 {strides = array<i32>} : memref<8x1xf32, #tpu.memory_space<vmem>>, vector<8x1xf32>,
    %c0_i32_13 = arith.constant 0 : i32
    %17 = arith.cmpi eq, %arg1, %c0_i32_13 : i32
    %18 = arith.extui %17 : i1 to i32
    %c0_i32_14 = arith.constant 0 : i32
    %19 = arith.cmpi ne, %18, %c0_i32_14 : i32
    scf.if %19 {
      %c0_15 = arith.constant 0 : index
      %c0_16 = arith.constant 0 : index
      %20 = vector.load %arg6[%c0_15, %c0_16] : memref<8x1xf32, #tpu.memory_space<vmem>>, vector<8x1xf32>
      %c0_17 = arith.constant 0 : index
      %c0_18 = arith.constant 0 : index
      %21 = vector.load %arg4[%c0_17, %c0_18] : memref<8x1xf32, #tpu.memory_space<vmem>>, vector<8x1xf32>
      tpu.vector_store %arg4[%c0_17, %c0_18], %20 {strides = array<i32>} : memref<8x1xf32, #tpu.memory_space<vmem>>, vector<8x1xf32>,
      %c0_19 = arith.constant 0 : index
      %c0_20 = arith.constant 0 : index
      %22 = vector.load %arg7[%c0_19, %c0_20] : memref<8x1xf32, #tpu.memory_space<vmem>>, vector<8x1xf32>
      %c0_21 = arith.constant 0 : index
      %c0_22 = arith.constant 0 : index
      %23 = vector.load %arg5[%c0_21, %c0_22] : memref<8x1xf32, #tpu.memory_space<vmem>>, vector<8x1xf32>
      tpu.vector_store %arg5[%c0_21, %c0_22], %22 {strides = array<i32>} : memref<8x1xf32, #tpu.memory_space<vmem>>, vector<8x1xf32>,
    } else {
    }
    return
  }
  func.func @transform_0(%arg0: i32, %arg1: i32) -> (i32, i32) {
    %c0_i32 = arith.constant 0 : i32
    return %arg0, %arg1 : i32, i32
  }
  func.func @transform_1(%arg0: i32, %arg1: i32) -> (i32, i32) {
    %c0_i32 = arith.constant 0 : i32
    return %arg0, %arg1 : i32, i32
  }
  func.func @transform_2(%arg0: i32, %arg1: i32) -> (i32, i32) {
    %c0_i32 = arith.constant 0 : i32
    %c0_i32_0 = arith.constant 0 : i32
    return %arg0, %c0_i32 : i32, i32
  }
  func.func @transform_3(%arg0: i32, %arg1: i32) -> (i32, i32) {
    %c0_i32 = arith.constant 0 : i32
    %c0_i32_0 = arith.constant 0 : i32
    return %arg0, %c0_i32 : i32, i32
  }
}

</mosaic_0001>

<llo_original>
// kernel: iou_loss.1
$region0: #{iou_loss.1}
  #allocation0 [shape = 'u32[]', space=smem, size = 0x4, offset = 0x4, fixed_abs, tag = 'smem constant byte address 0x4 - core index']
  #allocation1 [shape = 'u32[144,128]{1,0:T(1,128)}', space=vmem, size = 0x12000, scoped, tag = 'internal scratch']
  #allocation2 [shape = 'f32[8,1]{1,0:T(8,128)}', space=vmem, size = 0x1000, scoped, tag = 'scratch operand']
  #allocation3 [shape = 'f32[8,1]{1,0:T(8,128)}', space=vmem, size = 0x1000, scoped, tag = 'scratch operand']
  %s0 = inlined_call_operand.vmem [shape: f32[8,256], index: 0, kind: input, shape index: {}]
  %s1 = inlined_call_operand.vmem [shape: f32[8,256], index: 1, kind: input, shape index: {}]
  %s2 = inlined_call_operand.vmem [shape: f32[8,1], index: 2, kind: output, shape index: {0}]
  %s3 = inlined_call_operand.vmem [shape: f32[8,1], index: 3, kind: output, shape index: {1}]
  %4 = xla_tuple %s2, %s3
  %s5 = sld [smem:[#allocation0]]
  $region34: #{iou_loss.1} parent=0
    _
  %s7 = ssub.s32 1, %s5
  %s8 = scalar_select 0, %s7, %s5
  // Predicated region
  $region2: #{iou_loss.1} parent=0 // pred_check
    _
  $region3: #{iou_loss.1} parent=0 // pred_check_branch
    %10 = sbr.rel (0) target = $region5
  $region4: #{iou_loss.1} parent=0 // pred_region
    _
  $region5: #{iou_loss.1} parent=0 // pred_fallthru
    _
  // Predicated region
  $region6: #{iou_loss.1} parent=0 // pred_check
    _
  $region7: #{iou_loss.1} parent=0 // pred_check_branch
    %12 = sbr.rel (0) target = $region9
  $region8: #{iou_loss.1} parent=0 // pred_region
    _
  $region9: #{iou_loss.1} parent=0 // pred_fallthru
    _
  %p13 = scmp.eq.s32.totalorder 0, 0
  // Predicated region
  $region10: #{iou_loss.1} parent=0 // pred_check
    %p14 = pneg %p13
  $region11: #{iou_loss.1} parent=0 // pred_check_branch
    %16 = sbr.rel (%p14) target = $region13
  $region12: #{iou_loss.1} parent=0 // pred_region
    %vm17 = vcmask 7168
    %18 = vst.msk [vmem:[#allocation2] sm:$0xff] %vm17, 0.0
    %19 = vst.msk [vmem:[#allocation3] sm:$0xff] %vm17, 0.0
  $region13: #{iou_loss.1} parent=0 // pred_fallthru
    _
  %v20 = vld [vmem:[%s0] sm:$0xff]
  %v21 = vld [vmem:[%s0 + $0x8] sm:$0xff]
  %v22 = vld [vmem:[%s1] sm:$0xff]
  %v23 = vld [vmem:[%s1 + $0x8] sm:$0xff]
  %v24 = vld [vmem:[#allocation2] sm:$0xff]
  %v25 = vmul.f32 %v20, %v22
  %v26 = vmul.f32 %v21, %v23
  %v27 = vadd.f32 %v25, %v26
  %28 = vadd.xlane.f32.xlu0 %v27
  %v29 = vpop.xlane.xlu0 %28
  %v30 = vadd.f32 %v24, %v29
  %vm31 = vcmask 7168
  %32 = vst.msk [vmem:[#allocation2] sm:$0xff] %vm31, %v30
  %v33 = vld [vmem:[#allocation3] sm:$0xff]
  %v34 = vadd.f32 %v20, %v22
  %v35 = vadd.f32 %v21, %v23
  %v36 = vadd.f32 %v34, %v35
  %37 = vadd.xlane.f32.xlu0 %v36
  %v38 = vpop.xlane.xlu0 %37
  %v39 = vadd.f32 %v33, %v38
  %40 = vst.msk [vmem:[#allocation3] sm:$0xff] %vm31, %v39
  // Predicated region
  $region14: #{iou_loss.1} parent=0 // pred_check
    %p41 = pneg %p13
  $region15: #{iou_loss.1} parent=0 // pred_check_branch
    %43 = sbr.rel (%p41) target = $region17
  $region16: #{iou_loss.1} parent=0 // pred_region
    %v44 = vld [vmem:[#allocation2] sm:$0xff]
    %45 = vst.msk [vmem:[%s2] sm:$0xff] %vm31, %v44
    %v46 = vld [vmem:[#allocation3] sm:$0xff]
    %47 = vst.msk [vmem:[%s3] sm:$0xff] %vm31, %v46
  $region17: #{iou_loss.1} parent=0 // pred_fallthru
    _
  // Predicated region
  $region18: #{iou_loss.1} parent=0 // pred_check
    _
  $region19: #{iou_loss.1} parent=0 // pred_check_branch
    %49 = sbr.rel (0) target = $region21
  $region20: #{iou_loss.1} parent=0 // pred_region
    _
  $region21: #{iou_loss.1} parent=0 // pred_fallthru
    _
  // Predicated region
  $region22: #{iou_loss.1} parent=0 // pred_check
    _
  $region23: #{iou_loss.1} parent=0 // pred_check_branch
    %51 = sbr.rel (0) target = $region25
  $region24: #{iou_loss.1} parent=0 // pred_region
    _
  $region25: #{iou_loss.1} parent=0 // pred_fallthru
    _
  // Predicated region
  $region26: #{iou_loss.1} parent=0 // pred_check
    _
  $region27: #{iou_loss.1} parent=0 // pred_check_branch
    %53 = sbr.rel (0) target = $region29
  $region28: #{iou_loss.1} parent=0 // pred_region
    _
  $region29: #{iou_loss.1} parent=0 // pred_fallthru
    _
  // Predicated region
  $region30: #{iou_loss.1} parent=0 // pred_check
    _
  $region31: #{iou_loss.1} parent=0 // pred_check_branch
    %55 = sbr.rel (0) target = $region33
  $region32: #{iou_loss.1} parent=0 // pred_region
    _
  $region33: #{iou_loss.1} parent=0 // pred_fallthru
    _

</llo_original>
